<compile_context>
chip_gen: v7x
topology: tpu7x:2x2x1
jax: 0.10.0
libtpu: 0.0.40
codegen_flags: <defaults>
</compile_context>

<pallas_src>
import functools

import jax
import jax.numpy as jnp
import numpy as np
from jax.experimental import pallas as pl
from jax.experimental.pallas import tpu as pltpu

_LANES = 128


# ----------------------------------------------------------------------------
# Kernels
# ----------------------------------------------------------------------------
def _soft_iou_rows_kernel(pred_ref, targ_ref, out_ref, *,
                          rows_valid, tile_rows, need_mask):
    """Blocks: pred/targ (bn, tile_rows, 128); out (bn, 3, 128) accumulator."""
    r = pl.program_id(1)
    num_r = pl.num_programs(1)

    @pl.when(r == 0)
    def _init():
        out_ref[...] = jnp.zeros_like(out_ref)

    p = jax.nn.sigmoid(pred_ref[...].astype(jnp.float32))
    t = targ_ref[...].astype(jnp.float32)

    def _accumulate(pp, tt):
        # Lane-wise partial sums (sublane reduction only); the single
        # cross-lane reduction happens in the wrapper.
        out_ref[:, 0:1, :] += jnp.sum(pp * tt, axis=1, keepdims=True)
        out_ref[:, 1:2, :] += jnp.sum(pp, axis=1, keepdims=True)
        out_ref[:, 2:3, :] += jnp.sum(tt, axis=1, keepdims=True)

    if not need_mask:
        _accumulate(p, t)
    else:
        # Steady-state tiles: no masking work at all.
        @pl.when(r < num_r - 1)
        def _steady():
            _accumulate(p, t)

        # Last tile: rows past the logical per-sample extent are Pallas block
        # padding (garbage, possibly NaN after sigmoid) -> select-mask them.
        @pl.when(r == num_r - 1)
        def _tail():
            row = jax.lax.broadcasted_iota(jnp.int32, p.shape, 1) + r * tile_rows
            valid = row < rows_valid
            _accumulate(jnp.where(valid, p, 0.0), jnp.where(valid, t, 0.0))


def _soft_iou_flat_kernel(pred_ref, targ_ref, out_ref, *,
                          d_valid, cols, need_mask):
    """Blocks: pred/targ (n, cols); out (n, 3) accumulator (full extent)."""
    c = pl.program_id(0)
    num_c = pl.num_programs(0)

    @pl.when(c == 0)
    def _init():
        out_ref[...] = jnp.zeros_like(out_ref)

    p = jax.nn.sigmoid(pred_ref[...].astype(jnp.float32))
    t = targ_ref[...].astype(jnp.float32)

    def _accumulate(pp, tt):
        out_ref[:, 0:1] += jnp.sum(pp * tt, axis=1, keepdims=True)
        out_ref[:, 1:2] += jnp.sum(pp, axis=1, keepdims=True)
        out_ref[:, 2:3] += jnp.sum(tt, axis=1, keepdims=True)

    if not need_mask:
        _accumulate(p, t)
    else:
        @pl.when(c < num_c - 1)
        def _steady():
            _accumulate(p, t)

        @pl.when(c == num_c - 1)
        def _tail():
            lane = jax.lax.broadcasted_iota(jnp.int32, p.shape, 1) + c * cols
            valid = lane < d_valid
            _accumulate(jnp.where(valid, p, 0.0), jnp.where(valid, t, 0.0))


# ----------------------------------------------------------------------------
# Launch helpers
# ----------------------------------------------------------------------------
def _sums_rows_path(p3, t3, n, r_total, pack, budget_elems, phys_vmem):
    """(N, R, 128) lane-dense path; returns (N, 3, 128) partial sums."""
    budget_rows = max(pack, (budget_elems // _LANES) // pack * pack)
    if budget_rows >= r_total:
        # Whole sample fits: pack multiple samples per grid step.
        tile_rows = r_total
        num_r = 1
        bn = max(1, budget_elems // (r_total * _LANES))
        if n > 1:
            bn = min(bn, pl.cdiv(n, 2))   # keep >=2 sample blocks for megacore
        bn = min(bn, n)
    else:
        tile_rows = budget_rows           # multiple of the sublane packing
        num_r = pl.cdiv(r_total, tile_rows)
        bn = 1

    need_mask = (r_total % tile_rows) != 0

    tr_pad = ((tile_rows + 7) // 8) * 8
    in_bytes = bn * tr_pad * _LANES * (p3.dtype.itemsize + t3.dtype.itemsize)
    out_bytes = bn * 8 * _LANES * 4
    needed = 2 * (in_bytes + out_bytes) + (2 << 20)
    vmem_limit = int(min(phys_vmem * 3 // 4, max(32 << 20, needed)))

    kernel = functools.partial(_soft_iou_rows_kernel, rows_valid=r_total,
                               tile_rows=tile_rows, need_mask=need_mask)

    return pl.pallas_call(
        kernel,
        out_shape=jax.ShapeDtypeStruct((n, 3, _LANES), jnp.float32),
        grid_spec=pltpu.PrefetchScalarGridSpec(
            num_scalar_prefetch=0,
            grid=(pl.cdiv(n, bn), num_r),
            in_specs=[
                pl.BlockSpec((bn, tile_rows, _LANES), lambda i, r: (i, r, 0)),
                pl.BlockSpec((bn, tile_rows, _LANES), lambda i, r: (i, r, 0)),
            ],
            out_specs=pl.BlockSpec((bn, 3, _LANES), lambda i, r: (i, 0, 0)),
        ),
        compiler_params=pltpu.CompilerParams(
            dimension_semantics=("parallel", "arbitrary"),
            vmem_limit_bytes=vmem_limit),
    )(p3, t3)


def _sums_flat_path(p2, t2, n, d, budget_elems, phys_vmem):
    """(N, D) direct tiling (D % 128 != 0); returns (N, 3) full sums."""
    n_pad = ((n + 7) // 8) * 8
    itemsum = p2.dtype.itemsize + t2.dtype.itemsize

    cols = max(_LANES, (budget_elems // max(n, 1)) // _LANES * _LANES)
    cols_cap = max(_LANES, (phys_vmem // 4 // max(n_pad, 8) // itemsum)
                   // _LANES * _LANES)
    cols = min(cols, cols_cap)
    if cols >= d:
        cols = d            # full extent: legal for any D, no mask needed
    num_c = pl.cdiv(d, cols)
    need_mask = (d % cols) != 0

    cols_pad = ((cols + _LANES - 1) // _LANES) * _LANES
    in_bytes = n_pad * cols_pad * itemsum
    out_bytes = n_pad * _LANES * 4
    needed = 2 * (in_bytes + out_bytes) + (2 << 20)
    vmem_limit = int(min(phys_vmem * 3 // 4, max(32 << 20, needed)))

    kernel = functools.partial(_soft_iou_flat_kernel, d_valid=d, cols=cols,
                               need_mask=need_mask)

    return pl.pallas_call(
        kernel,
        out_shape=jax.ShapeDtypeStruct((n, 3), jnp.float32),
        grid_spec=pltpu.PrefetchScalarGridSpec(
            num_scalar_prefetch=0,
            grid=(num_c,),
            in_specs=[
                pl.BlockSpec((n, cols), lambda c: (0, c)),
                pl.BlockSpec((n, cols), lambda c: (0, c)),
            ],
            out_specs=pl.BlockSpec((n, 3), lambda c: (0, 0)),
        ),
        compiler_params=pltpu.CompilerParams(
            dimension_semantics=("arbitrary",),
            vmem_limit_bytes=vmem_limit),
    )(p2, t2)


# ----------------------------------------------------------------------------
# Public wrapper
# ----------------------------------------------------------------------------
def soft_iou_loss(pred, target, *, target_block_bytes=None):
    """pred, target: (N, C, H, W) (any trailing dims). Returns scalar f32."""
    assert pred.shape == target.shape
    n = pred.shape[0]
    d = int(np.prod(pred.shape[1:]))

    # Generation-aware block budget / VMEM cap.
    phys_vmem = 64 << 20
    try:
        phys_vmem = int(getattr(pltpu.get_tpu_info(), "vmem_capacity_bytes",
                                phys_vmem))
    except Exception:
        pass
    if target_block_bytes is None:
        target_block_bytes = (16 << 20) if phys_vmem >= (96 << 20) else (8 << 20)
    target_block_bytes = int(min(target_block_bytes, phys_vmem // 6))
    target_block_bytes = max(target_block_bytes, 8 * _LANES * 4)

    p2 = pred.reshape(n, d)
    t2 = target.reshape(n, d)

    itemsize = max(pred.dtype.itemsize, target.dtype.itemsize)
    pack = max(8, 32 // pred.dtype.itemsize, 32 // target.dtype.itemsize)
    budget_elems = max(pack * _LANES, target_block_bytes // itemsize)

    if d % _LANES == 0:
        r_total = d // _LANES
        p3 = p2.reshape(n, r_total, _LANES)
        t3 = t2.reshape(n, r_total, _LANES)
        sums = _sums_rows_path(p3, t3, n, r_total, pack, budget_elems, phys_vmem)
        inter = sums[:, 0, :].sum(axis=-1)
        psum = sums[:, 1, :].sum(axis=-1)
        tsum = sums[:, 2, :].sum(axis=-1)
    else:
        sums = _sums_flat_path(p2, t2, n, d, budget_elems, phys_vmem)
        inter, psum, tsum = sums[:, 0], sums[:, 1], sums[:, 2]

    smooth = jnp.float32(1.0)
    loss = (inter + smooth) / (psum + tsum - inter + smooth)
    return 1.0 - jnp.mean(loss)


# ----------------------------------------------------------------------------
# Reference + self-test
# ----------------------------------------------------------------------------
def _soft_iou_loss_ref(pred, target):
    n = pred.shape[0]
    p = jax.nn.sigmoid(pred.astype(jnp.float32)).reshape(n, -1)
    t = target.astype(jnp.float32).reshape(n, -1)
    inter = jnp.sum(p * t, axis=1)
    ps = jnp.sum(p, axis=1)
    ts = jnp.sum(t, axis=1)
    loss = (inter + 1.0) / (ps + ts - inter + 1.0)
    return 1.0 - jnp.mean(loss)


def _check(shape, key, **kwargs):
    k1, k2 = jax.random.split(key)
    pred = jax.random.normal(k1, shape, dtype=jnp.float32)
    target = (jax.random.uniform(k2, shape) > 0.5).astype(jnp.float32)
    out = jax.block_until_ready(soft_iou_loss(pred, target, **kwargs))
    ref = jax.block_until_ready(_soft_iou_loss_ref(pred, target))
    np.testing.assert_allclose(np.asarray(out), np.asarray(ref),
                               rtol=1e-5, atol=1e-5)


if __name__ == "__main__":
    key = jax.random.PRNGKey(0)
    keys = jax.random.split(key, 5)

    # Main path (D % 128 == 0), small batch.
    _check((2, 4, 16, 16), keys[0])
    # Main path with sample blocking (bn > 1).
    _check((8, 4, 16, 16), keys[1])
    # Main path with row tiling + masked last row tile (small block override).
    _check((1, 4, 48, 64), keys[2], target_block_bytes=20480)
    # Fallback flat path (D % 128 != 0), single full-extent block.
    _check((3, 3, 10, 10), keys[3])
    # Fallback flat path with column tiling + masked last column tile.
    _check((2, 3, 20, 20), keys[4], target_block_bytes=4096)

    print("KERNEL_OK")
</pallas_src>

<mosaic_0001>
module attributes {stable_mosaic.version = 11 : i64} {
  func.func @_soft_iou_rows_kernel(%arg0: i32, %arg1: i32, %arg2: memref<1x8x128xf32, #tpu.memory_space<vmem>>, %arg3: memref<1x8x128xf32, #tpu.memory_space<vmem>>, %arg4: memref<1x3x128xf32, #tpu.memory_space<vmem>>) attributes {dimension_semantics = [#tpu.dimension_semantics<parallel>, #tpu.dimension_semantics<arbitrary>], iteration_bounds = array<i64: 2, 1>, scalar_prefetch = 0 : i64, scratch_operands = 0 : i64, tpu.core_type = #tpu.core_type<tc>, window_params = [{transform_indices = @transform_0, window_bounds = array<i64: 1, 8, 128>}, {transform_indices = @transform_1, window_bounds = array<i64: 1, 8, 128>}, {transform_indices = @transform_2, window_bounds = array<i64: 1, 3, 128>}]} {
    %c0_i32 = arith.constant 0 : i32
    %0 = arith.cmpi eq, %arg1, %c0_i32 : i32
    %1 = arith.extui %0 : i1 to i32
    %c0_i32_0 = arith.constant 0 : i32
    %2 = arith.cmpi ne, %1, %c0_i32_0 : i32
    scf.if %2 {
      %cst_25 = arith.constant 0.000000e+00 : f32
      %26 = vector.broadcast %cst_25 : f32 to vector<1x3x128xf32>
      %c0_26 = arith.constant 0 : index
      %c0_27 = arith.constant 0 : index
      %c0_28 = arith.constant 0 : index
      %27 = vector.load %arg4[%c0_26, %c0_27, %c0_28] : memref<1x3x128xf32, #tpu.memory_space<vmem>>, vector<1x3x128xf32>
      tpu.vector_store %arg4[%c0_26, %c0_27, %c0_28], %26 {strides = array<i32>} : memref<1x3x128xf32, #tpu.memory_space<vmem>>, vector<1x3x128xf32>,
    } else {
    }
    %c0 = arith.constant 0 : index
    %c0_1 = arith.constant 0 : index
    %c0_2 = arith.constant 0 : index
    %3 = vector.load %arg2[%c0, %c0_1, %c0_2] : memref<1x8x128xf32, #tpu.memory_space<vmem>>, vector<1x8x128xf32>
    %4 = arith.negf %3 : vector<1x8x128xf32>
    %5 = math.exp %4 : vector<1x8x128xf32>
    %cst = arith.constant 1.000000e+00 : f32
    %6 = vector.broadcast %cst : f32 to vector<1x8x128xf32>
    %7 = arith.addf %6, %5 : vector<1x8x128xf32>
    %8 = arith.divf %6, %7 : vector<1x8x128xf32>
    %c0_3 = arith.constant 0 : index
    %c0_4 = arith.constant 0 : index
    %c0_5 = arith.constant 0 : index
    %9 = vector.load %arg3[%c0_3, %c0_4, %c0_5] : memref<1x8x128xf32, #tpu.memory_space<vmem>>, vector<1x8x128xf32>
    %c0_6 = arith.constant 0 : index
    %c0_7 = arith.constant 0 : index
    %c0_8 = arith.constant 0 : index
    %10 = vector.load %arg4[%c0_6, %c0_7, %c0_8] : memref<1x3x128xf32, #tpu.memory_space<vmem>>, vector<1x1x128xf32>
    %11 = arith.mulf %8, %9 : vector<1x8x128xf32>
    %cst_9 = arith.constant dense<0.000000e+00> : vector<1x128xf32>
    %12 = vector.multi_reduction <add>, %11, %cst_9 [1] : vector<1x8x128xf32> to vector<1x128xf32>
    %13 = vector.shape_cast %12 : vector<1x128xf32> to vector<1x1x128xf32>
    %14 = arith.addf %10, %13 : vector<1x1x128xf32>
    %c0_10 = arith.constant 0 : index
    %c0_11 = arith.constant 0 : index
    %c0_12 = arith.constant 0 : index
    %15 = vector.load %arg4[%c0_10, %c0_11, %c0_12] : memref<1x3x128xf32, #tpu.memory_space<vmem>>, vector<1x1x128xf32>
    tpu.vector_store %arg4[%c0_10, %c0_11, %c0_12], %14 {strides = array<i32>} : memref<1x3x128xf32, #tpu.memory_space<vmem>>, vector<1x1x128xf32>,
    %c0_13 = arith.constant 0 : index
    %c1 = arith.constant 1 : index
    %c0_14 = arith.constant 0 : index
    %16 = vector.load %arg4[%c0_13, %c1, %c0_14] : memref<1x3x128xf32, #tpu.memory_space<vmem>>, vector<1x1x128xf32>
    %cst_15 = arith.constant dense<0.000000e+00> : vector<1x128xf32>
    %17 = vector.multi_reduction <add>, %8, %cst_15 [1] : vector<1x8x128xf32> to vector<1x128xf32>
    %18 = vector.shape_cast %17 : vector<1x128xf32> to vector<1x1x128xf32>
    %19 = arith.addf %16, %18 : vector<1x1x128xf32>
    %c0_16 = arith.constant 0 : index
    %c1_17 = arith.constant 1 : index
    %c0_18 = arith.constant 0 : index
    %20 = vector.load %arg4[%c0_16, %c1_17, %c0_18] : memref<1x3x128xf32, #tpu.memory_space<vmem>>, vector<1x1x128xf32>
    tpu.vector_store %arg4[%c0_16, %c1_17, %c0_18], %19 {strides = array<i32>} : memref<1x3x128xf32, #tpu.memory_space<vmem>>, vector<1x1x128xf32>,
    %c0_19 = arith.constant 0 : index
    %c2 = arith.constant 2 : index
    %c0_20 = arith.constant 0 : index
    %21 = vector.load %arg4[%c0_19, %c2, %c0_20] : memref<1x3x128xf32, #tpu.memory_space<vmem>>, vector<1x1x128xf32>
    %cst_21 = arith.constant dense<0.000000e+00> : vector<1x128xf32>
    %22 = vector.multi_reduction <add>, %9, %cst_21 [1] : vector<1x8x128xf32> to vector<1x128xf32>
    %23 = vector.shape_cast %22 : vector<1x128xf32> to vector<1x1x128xf32>
    %24 = arith.addf %21, %23 : vector<1x1x128xf32>
    %c0_22 = arith.constant 0 : index
    %c2_23 = arith.constant 2 : index
    %c0_24 = arith.constant 0 : index
    %25 = vector.load %arg4[%c0_22, %c2_23, %c0_24] : memref<1x3x128xf32, #tpu.memory_space<vmem>>, vector<1x1x128xf32>
    tpu.vector_store %arg4[%c0_22, %c2_23, %c0_24], %24 {strides = array<i32>} : memref<1x3x128xf32, #tpu.memory_space<vmem>>, vector<1x1x128xf32>,
    return
  }
  func.func @transform_0(%arg0: i32, %arg1: i32) -> (i32, i32, i32) {
    %c0_i32 = arith.constant 0 : i32
    %c0_i32_0 = arith.constant 0 : i32
    return %arg0, %arg1, %c0_i32 : i32, i32, i32
  }
  func.func @transform_1(%arg0: i32, %arg1: i32) -> (i32, i32, i32) {
    %c0_i32 = arith.constant 0 : i32
    %c0_i32_0 = arith.constant 0 : i32
    return %arg0, %arg1, %c0_i32 : i32, i32, i32
  }
  func.func @transform_2(%arg0: i32, %arg1: i32) -> (i32, i32, i32) {
    %c0_i32 = arith.constant 0 : i32
    %c0_i32_0 = arith.constant 0 : i32
    %c0_i32_1 = arith.constant 0 : i32
    return %arg0, %c0_i32, %c0_i32_0 : i32, i32, i32
  }
}

</mosaic_0001>

<llo_original>
// kernel: tpu_custom_call.1
$region0: #{tpu_custom_call.1}
  #allocation0 [shape = 'u32[]', space=smem, size = 0x4, offset = 0x4, fixed_abs, tag = 'smem constant byte address 0x4 - core index']
  #allocation1 [shape = 'u32[144,128]{1,0:T(1,128)}', space=vmem, size = 0x12000, scoped, tag = 'internal scratch']
  %s0 = inlined_call_operand.hbm [shape: f32[2,8,128], index: 0, kind: input, shape index: {}]
  %s1 = inlined_call_operand.hbm [shape: f32[2,8,128], index: 1, kind: input, shape index: {}]
  %s2 = inlined_call_operand.vmem [shape: f32[2,3,128], index: 2, kind: output, shape index: {}]
  %s3 = sld [smem:[#allocation0]]
  $region53: #{tpu_custom_call.1} parent=0
    _
  %s5 = ssub.s32 1, %s3
  %s6 = scalar_select 0, %s5, %s3
  $region1: #{tpu_custom_call.1} parent=0
    #allocation2 [shape = 'u8[8192]{0}', space=vmem, size = 0x2000, scoped, tag = 'input window, operand 0']
    #allocation3 [shape = 's32[2]{0}', space=sflag, size = 0x8, scoped, tag = 'scoped memory for tpu_custom_call.1']
    #allocation4 [shape = 'u8[8192]{0}', space=vmem, size = 0x2000, scoped, tag = 'input window, operand 1']
    #allocation5 [shape = 's32[2]{0}', space=sflag, size = 0x8, scoped, tag = 'scoped memory for tpu_custom_call.1']
    %7 = vsyncpa [#allocation3], 0
    %s8 = scalar_lea.sflag [#allocation3], 1
    %9 = vsyncpa %s8, 0
    %10 = vsyncpa [#allocation5], 0
    %s11 = scalar_lea.sflag [#allocation5], 1
    %12 = vsyncpa %s11, 0
    loop: start=0, step=1, limit=4
    $region2: #{tpu_custom_call.1} parent=1 // loop_pre_header
      _
    $region3: #{tpu_custom_call.1} parent=1 // loop_header
      %s14 = sphi 0, %s18
      %p15 = scmp.ge.s32.totalorder %s14, 4
      %s21 = sphi 0, %s33
      %s22 = sphi 0, %s29
      %s23 = sphi 0, %s21
      %s24 = sphi 0, %s22
      %s25 = sphi 0, %s23
      %s26 = sphi 0, %s24
      %s38 = sphi 0, %s40
      %s41 = sphi 0, %s38
      %s42 = sphi 0, %s41
      %s58 = sphi 0, %s42
      %s66 = sphi 0, %s68
      %s69 = sphi 0, %s66
      %s70 = sphi 0, %s69
      %s86 = sphi 0, %s70
      %s92 = sphi 0, %s94
      %s95 = sphi 0, %s92
      %s96 = sphi 0, %s95
      %s112 = sphi 0, %s96
    $region4: #{tpu_custom_call.1} parent=1 // loop_header_branch
      %17 = sbr.rel (%p15) target = $region8
    $region5: #{tpu_custom_call.1} parent=1 // loop_body
      %s19 = ssub.s32 %s14, 1
      %s20 = ssub.s32 %s14, 2
      %s27 = sadd.s32 1, %s22
      %p28 = scmp.ge.s32.totalorder %s27, 1
      %s29 = scalar_select %p28, 0, %s27
      %s30 = sadd.s32 1, %s21
      %s31 = scalar_select %p28, %s30, %s21
      %p32 = scmp.ge.s32.totalorder %s31, 2
      %s33 = scalar_select %p32, 0, %s31
      %s34 = ssub.s32 %s21, %s33
      %s35 = ssub.s32 %s22, %s29
      %s36 = sor.u32 %s34, %s35
      %p37 = scmp.eq.s32.totalorder %s36, 0
      %s39 = sadd.s32 %s38, 1
      %s40 = scalar_select %p37, %s38, %s39
      %p43 = pneg %p37
      %p44 = scmp.eq.s32.totalorder %s14, 1
      %p45 = por %p43, %p44
      %p46 = scmp.ne.s32.totalorder %s38, %s41
      %p47 = scmp.eq.s32.totalorder %s14, 0
      %p48 = por %p46, %p47
      %p49 = scmp.ne.s32.totalorder %s38, %s41
      %p50 = scmp.eq.s32.totalorder %s19, 1
      %p51 = por %p49, %p50
      %p52 = scmp.ne.s32.totalorder %s41, %s42
      %p53 = scmp.eq.s32.totalorder %s19, 0
      %p54 = por %p52, %p53
      %p55 = scmp.ne.s32.totalorder %s41, %s42
      %p56 = scmp.eq.s32.totalorder %s20, 1
      %p57 = por %p55, %p56
      %p59 = scmp.ne.s32.totalorder %s42, %s58
      %p60 = scmp.eq.s32.totalorder %s20, 0
      %p61 = por %p59, %p60
      %s62 = ssub.s32 %s21, %s33
      %s63 = ssub.s32 %s22, %s29
      %s64 = sor.u32 %s62, %s63
      %p65 = scmp.eq.s32.totalorder %s64, 0
      %s67 = sadd.s32 %s66, 1
      %s68 = scalar_select %p65, %s66, %s67
      %p71 = pneg %p65
      %p72 = scmp.eq.s32.totalorder %s14, 1
      %p73 = por %p71, %p72
      %p74 = scmp.ne.s32.totalorder %s66, %s69
      %p75 = scmp.eq.s32.totalorder %s14, 0
      %p76 = por %p74, %p75
      %p77 = scmp.ne.s32.totalorder %s66, %s69
      %p78 = scmp.eq.s32.totalorder %s19, 1
      %p79 = por %p77, %p78
      %p80 = scmp.ne.s32.totalorder %s69, %s70
      %p81 = scmp.eq.s32.totalorder %s19, 0
      %p82 = por %p80, %p81
      %p83 = scmp.ne.s32.totalorder %s69, %s70
      %p84 = scmp.eq.s32.totalorder %s20, 1
      %p85 = por %p83, %p84
      %p87 = scmp.ne.s32.totalorder %s70, %s86
      %p88 = scmp.eq.s32.totalorder %s20, 0
      %p89 = por %p87, %p88
      %s90 = ssub.s32 %s21, %s33
      %p91 = scmp.eq.s32.totalorder %s90, 0
      %s93 = sadd.s32 %s92, 1
      %s94 = scalar_select %p91, %s92, %s93
      %p97 = pneg %p91
      %p98 = scmp.eq.s32.totalorder %s14, 1
      %p99 = por %p97, %p98
      %p100 = scmp.ne.s32.totalorder %s92, %s95
      %p101 = scmp.eq.s32.totalorder %s14, 0
      %p102 = por %p100, %p101
      %p103 = scmp.ne.s32.totalorder %s92, %s95
      %p104 = scmp.eq.s32.totalorder %s19, 1
      %p105 = por %p103, %p104
      %p106 = scmp.ne.s32.totalorder %s95, %s96
      %p107 = scmp.eq.s32.totalorder %s19, 0
      %p108 = por %p106, %p107
      %p109 = scmp.ne.s32.totalorder %s95, %s96
      %p110 = scmp.eq.s32.totalorder %s20, 1
      %p111 = por %p109, %p110
      %p113 = scmp.ne.s32.totalorder %s96, %s112
      %p114 = scmp.eq.s32.totalorder %s20, 0
      %p115 = por %p113, %p114
      %p116 = scmp.le.s32.totalorder 1, %s14
      %p117 = scmp.lt.s32.totalorder %s14, 3
      %p118 = pnand %p116, %p117
      %p119 = pneg %p118
      // Predicated region
      $region9: #{tpu_custom_call.1} parent=5 // pred_check
        _
      $region10: #{tpu_custom_call.1} parent=5 // pred_check_branch
        %121 = sbr.rel (%p118) target = $region12
      $region11: #{tpu_custom_call.1} parent=5 // pred_region
        %s122 = ssub.s32 %s14, 1
      $region12: #{tpu_custom_call.1} parent=5 // pred_fallthru
        _
      %p123 = scmp.lt.s32.totalorder %s14, 2
      // Predicated region
      $region13: #{tpu_custom_call.1} parent=5 // pred_check
        %p124 = pneg %p123
      $region14: #{tpu_custom_call.1} parent=5 // pred_check_branch
        %126 = sbr.rel (%p124) target = $region16
      $region15: #{tpu_custom_call.1} parent=5 // pred_region
        // Predicated region
        $region17: #{tpu_custom_call.1} parent=15 // pred_check
          %p127 = pneg %p48
        $region18: #{tpu_custom_call.1} parent=15 // pred_check_branch
          %129 = sbr.rel (%p127) target = $region20
        $region19: #{tpu_custom_call.1} parent=15 // pred_region
          %s130 = sand.u32 %s38, 1
          %s131 = scalar_lea.sflag [#allocation3], %s130
          %s132 = sand.u32 %s38, 1
          %s133 = smul.addr %s132, 8
          %s134 = scalar_lea.vmem [#allocation2], %s133
          %s136 = ssub.s32 128, 128
          %137 = vsyncadd %s131, %s136
          %s138 = sadd.s32 %s22, %s21
          %s139 = smul.addr %s138, 128
          %s140 = scalar_lea.hbm %s0, %s139
          %s142 = sshll.u32 %s134, 4
          %s143 = int_to_ptr.vmem [resolvable:$true] %s142
          %145 = dma.hbm_to_vmem [thread:$0]  %s140, 128, %s143, %s131
        $region20: #{tpu_custom_call.1} parent=15 // pred_fallthru
          _
        // Predicated region
        $region21: #{tpu_custom_call.1} parent=15 // pred_check
          %p146 = pneg %p76
        $region22: #{tpu_custom_call.1} parent=15 // pred_check_branch
          %148 = sbr.rel (%p146) target = $region24
        $region23: #{tpu_custom_call.1} parent=15 // pred_region
          %s149 = sand.u32 %s66, 1
          %s150 = scalar_lea.sflag [#allocation5], %s149
          %s151 = sand.u32 %s66, 1
          %s152 = smul.addr %s151, 8
          %s153 = scalar_lea.vmem [#allocation4], %s152
          %s155 = ssub.s32 128, 128
          %156 = vsyncadd %s150, %s155
          %s157 = sadd.s32 %s22, %s21
          %s158 = smul.addr %s157, 128
          %s159 = scalar_lea.hbm %s1, %s158
          %s161 = sshll.u32 %s153, 4
          %s162 = int_to_ptr.vmem [resolvable:$true] %s161
          %164 = dma.hbm_to_vmem [thread:$0]  %s159, 128, %s162, %s150
        $region24: #{tpu_custom_call.1} parent=15 // pred_fallthru
          _
      $region16: #{tpu_custom_call.1} parent=5 // pred_fallthru
        _
      %p165 = scmp.le.s32.totalorder 1, %s14
      %p166 = scmp.lt.s32.totalorder %s14, 3
      %p167 = pnand %p165, %p166
      %p168 = pneg %p167
      // Predicated region
      $region25: #{tpu_custom_call.1} parent=5 // pred_check
        _
      $region26: #{tpu_custom_call.1} parent=5 // pred_check_branch
        %170 = sbr.rel (%p167) target = $region28
      $region27: #{tpu_custom_call.1} parent=5 // pred_region
        %s171 = ssub.s32 %s14, 1
        %s172 = sand.u32 %s41, 1
        %s173 = scalar_lea.sflag [#allocation3], %s172
        %s174 = sand.u32 %s41, 1
        %s175 = smul.addr %s174, 8
        %s176 = scalar_lea.vmem [#allocation2], %s175
        // Predicated region
        $region29: #{tpu_custom_call.1} parent=27 // pred_check
          %p177 = pneg %p54
        $region30: #{tpu_custom_call.1} parent=27 // pred_check_branch
          %179 = sbr.rel (%p177) target = $region32
        $region31: #{tpu_custom_call.1} parent=27 // pred_region
          %180 = dma.done %s173, 128
        $region32: #{tpu_custom_call.1} parent=27 // pred_fallthru
          _
        %s181 = sand.u32 %s69, 1
        %s182 = scalar_lea.sflag [#allocation5], %s181
        %s183 = sand.u32 %s69, 1
        %s184 = smul.addr %s183, 8
        %s185 = scalar_lea.vmem [#allocation4], %s184
        // Predicated region
        $region33: #{tpu_custom_call.1} parent=27 // pred_check
          %p186 = pneg %p82
        $region34: #{tpu_custom_call.1} parent=27 // pred_check_branch
          %188 = sbr.rel (%p186) target = $region36
        $region35: #{tpu_custom_call.1} parent=27 // pred_region
          %189 = dma.done %s182, 128
        $region36: #{tpu_custom_call.1} parent=27 // pred_fallthru
          _
        %s190 = sand.u32 %s41, 1
        %s191 = scalar_lea.sflag [#allocation3], %s190
        %s192 = sand.u32 %s41, 1
        %s193 = smul.addr %s192, 8
        %s194 = scalar_lea.vmem [#allocation2], %s193
        %p195 = pneg %p54
        %p196 = pneg %p51
        %s197 = sand.u32 %s69, 1
        %s198 = scalar_lea.sflag [#allocation5], %s197
        %s199 = sand.u32 %s69, 1
        %s200 = smul.addr %s199, 8
        %s201 = scalar_lea.vmem [#allocation4], %s200
        %p202 = pneg %p82
        %p203 = pneg %p79
        %p204 = pneg %p108
        %p205 = pneg %p105
        %p206 = scmp.lt.s32.totalorder %s23, 1
        %s207 = scalar_select %p206, %s23, 1
        %s208 = smul.addr %s207, 4
        %s209 = scalar_lea.vmem %s2, %s208
        %p210 = scmp.lt.s32.totalorder %s23, 1
        %s211 = scalar_select %p210, %s23, 1
        %s212 = smul.addr %s211, 4
        %s213 = scalar_lea.vmem %s2, %s212
        %p214 = scmp.eq.s32.totalorder %s24, 0
        // Predicated region
        $region37: #{tpu_custom_call.1} parent=27 // pred_check
          %p215 = pneg %p214
        $region38: #{tpu_custom_call.1} parent=27 // pred_check_branch
          %217 = sbr.rel (%p215) target = $region40
        $region39: #{tpu_custom_call.1} parent=27 // pred_region
          %218 = vst [vmem:[%s213] sm:$0x7] 0.0
        $region40: #{tpu_custom_call.1} parent=27 // pred_fallthru
          _
        %v219 = vld [vmem:[%s176] sm:$0xff]
        %v220 = vxor.u32 %v219, 2147483648
        %v221 = vmul.f32 %v220, 1.442695
        %v222 = vpow.pop %v221
        %v223 = vadd.f32 %v222, 1.0
        %v224 = vrcp.pop %v223
        %v225 = vmul.f32 1.0, %v224
        %v226 = vld [vmem:[%s185] sm:$0xff]
        %v227 = vld [vmem:[%s213] sm:$0x1]
        %v228 = vmul.f32 %v225, %v226
        %v229 = vrot.slane %v228, 4
        %v230 = vadd.f32 %v228, %v229
        %v231 = vrot.slane %v230, 2
        %v232 = vadd.f32 %v230, %v231
        %v233 = vrot.slane %v232, 1
        %v234 = vadd.f32 %v232, %v233
        %v235 = vadd.f32 %v227, %v234
        %236 = vst [vmem:[%s213] sm:$0x1] %v235
        %v237 = vld [vmem:[%s213 + $0x1] sm:$0x1]
        %v238 = vrot.slane %v225, 4
        %v239 = vadd.f32 %v225, %v238
        %v240 = vrot.slane %v239, 2
        %v241 = vadd.f32 %v239, %v240
        %v242 = vrot.slane %v241, 1
        %v243 = vadd.f32 %v241, %v242
        %v244 = vadd.f32 %v237, %v243
        %245 = vst [vmem:[%s213 + $0x1] sm:$0x1] %v244
        %v246 = vld [vmem:[%s213 + $0x2] sm:$0x1]
        %v247 = vrot.slane %v226, 4
        %v248 = vadd.f32 %v226, %v247
        %v249 = vrot.slane %v248, 2
        %v250 = vadd.f32 %v248, %v249
        %v251 = vrot.slane %v250, 1
        %v252 = vadd.f32 %v250, %v251
        %v253 = vadd.f32 %v246, %v252
        %254 = vst [vmem:[%s213 + $0x2] sm:$0x1] %v253
        %p255 = scmp.lt.s32.totalorder %s23, 1
        %s256 = scalar_select %p255, %s23, 1
        %s257 = smul.addr %s256, 4
        %s258 = scalar_lea.vmem %s2, %s257
        // Predicated region
        $region41: #{tpu_custom_call.1} parent=27 // pred_check
          %p259 = pneg %p105
        $region42: #{tpu_custom_call.1} parent=27 // pred_check_branch
          %261 = sbr.rel (%p259) target = $region44
        $region43: #{tpu_custom_call.1} parent=27 // pred_region
          _
        $region44: #{tpu_custom_call.1} parent=27 // pred_fallthru
          _
      $region28: #{tpu_custom_call.1} parent=5 // pred_fallthru
        _
      %p262 = scmp.le.s32.totalorder 2, %s14
      // Predicated region
      $region45: #{tpu_custom_call.1} parent=5 // pred_check
        %p263 = pneg %p262
      $region46: #{tpu_custom_call.1} parent=5 // pred_check_branch
        %265 = sbr.rel (%p263) target = $region48
      $region47: #{tpu_custom_call.1} parent=5 // pred_region
        %s266 = ssub.s32 %s14, 2
        // Predicated region
        $region49: #{tpu_custom_call.1} parent=47 // pred_check
          %p267 = pneg %p111
        $region50: #{tpu_custom_call.1} parent=47 // pred_check_branch
          %269 = sbr.rel (%p267) target = $region52
        $region51: #{tpu_custom_call.1} parent=47 // pred_region
          %p270 = scmp.lt.s32.totalorder %s25, 1
          %s271 = scalar_select %p270, %s25, 1
          %s272 = smul.addr %s271, 4
          %s273 = scalar_lea.vmem %s2, %s272
        $region52: #{tpu_custom_call.1} parent=47 // pred_fallthru
          _
      $region48: #{tpu_custom_call.1} parent=5 // pred_fallthru
        _
    $region6: #{tpu_custom_call.1} parent=1 // loop_footer
      %s18 = sadd.s32 1, %s14
    $region7: #{tpu_custom_call.1} parent=1 // loop_footer_branch
      %13 = sbr.rel target = $region3
    $region8: #{tpu_custom_call.1} parent=1 // loop_exit
      _
    %274 = vsyncpa [#allocation3], 1
    %s275 = scalar_lea.sflag [#allocation3], 1
    %276 = vsyncpa %s275, 1
    %277 = vsyncpa [#allocation5], 1
    %s278 = scalar_lea.sflag [#allocation5], 1
    %279 = vsyncpa %s278, 1

</llo_original>
